<compile_context>
chip_gen: v7x
topology: tpu7x:2x2x1
jax: 0.10.0
libtpu: 0.0.40
codegen_flags: <defaults>
</compile_context>

<pallas_src>
import math
import jax
import jax.numpy as jnp
from jax.experimental import pallas as pl
from jax.experimental.pallas import tpu as pltpu

LANE = 128        # lane-dense feature padding granularity
ROW_GRAN = 512    # N (rows/cols of adj) padding granularity


def _round_up(x, m):
    return (x + m - 1) // m * m


def _largest_divisor_tile(n, candidates):
    for c in candidates:
        if c <= n and n % c == 0:
            return c
    return n


# ---------------------------------------------------------------------------
# Kernel 1: support = X @ W^T + b   (nn.Linear), K-tiled over F_in, bf16 out.
# ---------------------------------------------------------------------------
def linear_kernel(x_ref, wT_ref, b_ref, out_ref, acc_ref):
    k = pl.program_id(1)

    @pl.when(k == 0)
    def _():
        acc_ref[...] = jnp.zeros_like(acc_ref)

    acc_ref[...] += jnp.dot(x_ref[...], wT_ref[...],
                            preferred_element_type=jnp.float32)

    @pl.when(k == pl.num_programs(1) - 1)
    def _():
        out_ref[...] = (acc_ref[...] + b_ref[...]).astype(out_ref.dtype)


def linear_pallas(x_pad, wT_pad, b_pad, *, tl, tkf):
    N_pad, F_in_pad = x_pad.shape
    F_pad = wT_pad.shape[1]
    return pl.pallas_call(
        linear_kernel,
        out_shape=jax.ShapeDtypeStruct((N_pad, F_pad), jnp.bfloat16),
        grid_spec=pltpu.PrefetchScalarGridSpec(
            num_scalar_prefetch=0,
            grid=(N_pad // tl, F_in_pad // tkf),
            in_specs=[
                pl.BlockSpec((tl, tkf), lambda i, k: (i, k)),       # X tile
                pl.BlockSpec((tkf, F_pad), lambda i, k: (k, 0)),    # W^T K-tile
                pl.BlockSpec((1, F_pad), lambda i, k: (0, 0)),      # bias row
            ],
            out_specs=pl.BlockSpec((tl, F_pad), lambda i, k: (i, 0)),
            scratch_shapes=[pltpu.VMEM((tl, F_pad), jnp.float32)],
        ),
        compiler_params=pltpu.CompilerParams(
            dimension_semantics=("parallel", "arbitrary"),
            vmem_limit_bytes=32 * 1024 * 1024,
        ),
    )(x_pad, wT_pad, b_pad)


# ---------------------------------------------------------------------------
# Kernel 2: out = adj @ support   (K-tiled; accumulate directly into f32 out).
# adj streamed f32 from HBM, cast to bf16 in-kernel; support is bf16.
# ---------------------------------------------------------------------------
def spmm_kernel(adj_ref, sup_ref, out_ref):
    @pl.when(pl.program_id(1) == 0)
    def _():
        out_ref[...] = jnp.zeros_like(out_ref)

    out_ref[...] += jnp.dot(adj_ref[...].astype(jnp.bfloat16), sup_ref[...],
                            preferred_element_type=jnp.float32)


def spmm_pallas(adj_pad, support_bf16, *, tm, tk):
    N_pad = adj_pad.shape[0]
    F_pad = support_bf16.shape[1]

    cost = pl.CostEstimate(
        flops=2 * N_pad * N_pad * F_pad,
        transcendentals=0,
        bytes_accessed=(N_pad * N_pad * 4                       # adj (f32, once)
                        + (N_pad // tm) * N_pad * F_pad * 2     # support re-reads
                        + N_pad * F_pad * 4),                   # out write (f32)
    )
    return pl.pallas_call(
        spmm_kernel,
        out_shape=jax.ShapeDtypeStruct((N_pad, F_pad), jnp.float32),
        grid_spec=pltpu.PrefetchScalarGridSpec(
            num_scalar_prefetch=0,
            grid=(N_pad // tm, N_pad // tk),
            in_specs=[
                pl.BlockSpec((tm, tk), lambda i, k: (i, k)),      # adj tile (f32)
                pl.BlockSpec((tk, F_pad), lambda i, k: (k, 0)),   # support K-tile
            ],
            out_specs=pl.BlockSpec((tm, F_pad), lambda i, k: (i, 0)),
        ),
        compiler_params=pltpu.CompilerParams(
            dimension_semantics=("parallel", "arbitrary"),
            vmem_limit_bytes=32 * 1024 * 1024,
        ),
        cost_estimate=cost,
    )(adj_pad, support_bf16)


def graph_convolution(x, adj, weight, bias):
    """GraphConvolution forward: adj @ (x @ weight.T + bias).

    x: (N, F_in) f32, adj: (N, N) f32, weight: (F_out, F_in) f32,
    bias: (F_out,) f32.  Returns (N, F_out) f32.
    """
    N, F_in = x.shape
    F_out = weight.shape[0]
    assert adj.shape == (N, N)

    # Padded sizes: lane-dense features, 512-granular rows/cols.
    F_pad = _round_up(max(F_out, LANE), LANE)
    F_in_pad = _round_up(max(F_in, LANE), LANE)
    N_pad = _round_up(max(N, ROW_GRAN), ROW_GRAN)

    # Tile selection: big K tiles; row tiles large but with >= 2 blocks so the
    # "parallel" axis splits across both TensorCores on v7x.
    tk = _largest_divisor_tile(N_pad, (1024, 512))
    tm = tk if (N_pad // tk) >= 2 else tk // 2
    tl = tm
    tkf = _largest_divisor_tile(F_in_pad, (512, 256, 128))

    # Zero-pad inputs only when actually needed (avoid extra HBM passes).
    if (N_pad, F_in_pad) != (N, F_in):
        x_pad = jnp.zeros((N_pad, F_in_pad), jnp.float32).at[:N, :F_in].set(x)
    else:
        x_pad = x
    if N_pad != N:
        adj_pad = jnp.zeros((N_pad, N_pad), jnp.float32).at[:N, :N].set(adj)
    else:
        adj_pad = adj

    wT_pad = jnp.zeros((F_in_pad, F_pad), jnp.float32).at[:F_in, :F_out].set(weight.T)
    b_pad = jnp.zeros((1, F_pad), jnp.float32).at[0, :F_out].set(bias)

    # support = X @ W^T + b, stored bf16 for the mem-bound second matmul.
    support = linear_pallas(x_pad, wT_pad, b_pad, tl=tl, tkf=tkf)

    # out = adj @ support (adj stays f32 in HBM; cast per-tile in-kernel).
    out_pad = spmm_pallas(adj_pad, support, tm=tm, tk=tk)
    return out_pad[:N, :F_out]


if __name__ == "__main__":
    # Small, deterministic problem.
    N, F_in, F_out = 512, 128, 64
    key = jax.random.PRNGKey(0)
    kx, ka, kw, kb = jax.random.split(key, 4)

    x = jax.random.normal(kx, (N, F_in), dtype=jnp.float32)
    adj = jax.random.uniform(ka, (N, N), dtype=jnp.float32)

    # Deterministic parameter init mirroring the module's init():
    # weight ~ U(-1/sqrt(in_features), 1/sqrt(in_features)); bias likewise.
    stdv = 1.0 / math.sqrt(F_in)
    weight = jax.random.uniform(kw, (F_out, F_in), minval=-stdv, maxval=stdv,
                                dtype=jnp.float32)
    bias = jax.random.uniform(kb, (F_out,), minval=-stdv, maxval=stdv,
                              dtype=jnp.float32)

    out = graph_convolution(x, adj, weight, bias)
    out = jax.block_until_ready(out)

    # Reference in plain JAX (f32). bf16 adj/support streams -> looser tolerance.
    ref = adj @ (x @ weight.T + bias)
    assert out.shape == (N, F_out)
    rel_err = jnp.max(jnp.abs(out - ref)) / (jnp.max(jnp.abs(ref)) + 1e-6)
    assert rel_err < 1e-2, f"relative error too high: {rel_err}"

    # TODO(synk): the original forward() has no return statement (returns None);
    # we return `output` here since that's the computed value.
    print("KERNEL_OK")
</pallas_src>

<mosaic_0001>
module attributes {stable_mosaic.version = 11 : i64} {
  func.func @linear_kernel(%arg0: i32, %arg1: i32, %arg2: memref<256x128xf32, #tpu.memory_space<vmem>>, %arg3: memref<128x128xf32, #tpu.memory_space<vmem>>, %arg4: memref<1x128xf32, #tpu.memory_space<vmem>>, %arg5: memref<256x128xbf16, #tpu.memory_space<vmem>>, %arg6: memref<256x128xf32, #tpu.memory_space<vmem>>) attributes {dimension_semantics = [#tpu.dimension_semantics<parallel>, #tpu.dimension_semantics<arbitrary>], iteration_bounds = array<i64: 2, 1>, scalar_prefetch = 0 : i64, scratch_operands = 1 : i64, tpu.core_type = #tpu.core_type<tc>, window_params = [{transform_indices = @transform_0, window_bounds = array<i64: 256, 128>}, {transform_indices = @transform_1, window_bounds = array<i64: 128, 128>}, {pipeline_mode = #tpu.pipeline_mode<synchronous>, transform_indices = @transform_2, window_bounds = array<i64: 1, 128>}, {transform_indices = @transform_3, window_bounds = array<i64: 256, 128>}]} {
    %c0_i32 = arith.constant 0 : i32
    %0 = arith.cmpi eq, %arg1, %c0_i32 : i32
    %1 = arith.extui %0 : i1 to i32
    %c0_i32_0 = arith.constant 0 : i32
    %2 = arith.cmpi ne, %1, %c0_i32_0 : i32
    scf.if %2 {
      %cst_10 = arith.constant 0.000000e+00 : f32
      %12 = vector.broadcast %cst_10 : f32 to vector<256x128xf32>
      %c0_11 = arith.constant 0 : index
      %c0_12 = arith.constant 0 : index
      %13 = vector.load %arg6[%c0_11, %c0_12] : memref<256x128xf32, #tpu.memory_space<vmem>>, vector<256x128xf32>
      tpu.vector_store %arg6[%c0_11, %c0_12], %12 {strides = array<i32>} : memref<256x128xf32, #tpu.memory_space<vmem>>, vector<256x128xf32>,
    } else {
    }
    %c0 = arith.constant 0 : index
    %c0_1 = arith.constant 0 : index
    %3 = vector.load %arg6[%c0, %c0_1] : memref<256x128xf32, #tpu.memory_space<vmem>>, vector<256x128xf32>
    %c0_2 = arith.constant 0 : index
    %c0_3 = arith.constant 0 : index
    %4 = vector.load %arg2[%c0_2, %c0_3] : memref<256x128xf32, #tpu.memory_space<vmem>>, vector<256x128xf32>
    %c0_4 = arith.constant 0 : index
    %c0_5 = arith.constant 0 : index
    %5 = vector.load %arg3[%c0_4, %c0_5] : memref<128x128xf32, #tpu.memory_space<vmem>>, vector<128x128xf32>
    %cst = arith.constant dense<0.000000e+00> : vector<256x128xf32>
    %6 = tpu.matmul %4, %5, %cst {dimension_numbers = #tpu.dot_dimension_numbers<[1], [0], [0], [1], [0, 0, 1, 1], [], []>} : vector<256x128xf32>, vector<128x128xf32>, vector<256x128xf32> -> vector<256x128xf32>
    %7 = arith.addf %3, %6 : vector<256x128xf32>
    %c0_6 = arith.constant 0 : index
    %c0_7 = arith.constant 0 : index
    %8 = vector.load %arg6[%c0_6, %c0_7] : memref<256x128xf32, #tpu.memory_space<vmem>>, vector<256x128xf32>
    tpu.vector_store %arg6[%c0_6, %c0_7], %7 {strides = array<i32>} : memref<256x128xf32, #tpu.memory_space<vmem>>, vector<256x128xf32>,
    %c0_i32_8 = arith.constant 0 : i32
    %9 = arith.cmpi eq, %arg1, %c0_i32_8 : i32
    %10 = arith.extui %9 : i1 to i32
    %c0_i32_9 = arith.constant 0 : i32
    %11 = arith.cmpi ne, %10, %c0_i32_9 : i32
    scf.if %11 {
      %c0_10 = arith.constant 0 : index
      %c0_11 = arith.constant 0 : index
      %12 = vector.load %arg6[%c0_10, %c0_11] : memref<256x128xf32, #tpu.memory_space<vmem>>, vector<256x128xf32>
      %c0_12 = arith.constant 0 : index
      %c0_13 = arith.constant 0 : index
      %13 = vector.load %arg4[%c0_12, %c0_13] : memref<1x128xf32, #tpu.memory_space<vmem>>, vector<1x128xf32>
      %14 = vector.broadcast %13 : vector<1x128xf32> to vector<256x128xf32>
      %15 = arith.addf %12, %14 : vector<256x128xf32>
      %16 = arith.truncf %15 : vector<256x128xf32> to vector<256x128xbf16>
      %c0_14 = arith.constant 0 : index
      %c0_15 = arith.constant 0 : index
      %17 = vector.load %arg5[%c0_14, %c0_15] : memref<256x128xbf16, #tpu.memory_space<vmem>>, vector<256x128xbf16>
      tpu.vector_store %arg5[%c0_14, %c0_15], %16 {strides = array<i32>} : memref<256x128xbf16, #tpu.memory_space<vmem>>, vector<256x128xbf16>,
    } else {
    }
    return
  }
  func.func @transform_0(%arg0: i32, %arg1: i32) -> (i32, i32) {
    %c0_i32 = arith.constant 0 : i32
    return %arg0, %arg1 : i32, i32
  }
  func.func @transform_1(%arg0: i32, %arg1: i32) -> (i32, i32) {
    %c0_i32 = arith.constant 0 : i32
    %c0_i32_0 = arith.constant 0 : i32
    return %arg1, %c0_i32 : i32, i32
  }
  func.func @transform_2(%arg0: i32, %arg1: i32) -> (i32, i32) {
    %c0_i32 = arith.constant 0 : i32
    %c0_i32_0 = arith.constant 0 : i32
    %c0_i32_1 = arith.constant 0 : i32
    return %c0_i32, %c0_i32_0 : i32, i32
  }
  func.func @transform_3(%arg0: i32, %arg1: i32) -> (i32, i32) {
    %c0_i32 = arith.constant 0 : i32
    %c0_i32_0 = arith.constant 0 : i32
    return %arg0, %c0_i32 : i32, i32
  }
}

</mosaic_0001>

<llo_original>
// kernel: tpu_custom_call.1
$region0: #{tpu_custom_call.1}
  #allocation0 [shape = 'u32[]', space=smem, size = 0x4, offset = 0x4, fixed_abs, tag = 'smem constant byte address 0x4 - core index']
  #allocation1 [shape = 'u32[144,128]{1,0:T(1,128)}', space=vmem, size = 0x12000, scoped, tag = 'internal scratch']
  #allocation2 [shape = 'f32[256,128]{1,0:T(8,128)}', space=vmem, size = 0x20000, scoped, tag = 'scratch operand']
  %s0 = inlined_call_operand.hbm [shape: f32[512,128], index: 0, kind: input, shape index: {}]
  %s1 = inlined_call_operand.hbm [shape: f32[128,128], index: 1, kind: input, shape index: {}]
  %s2 = inlined_call_operand.vmem [shape: f32[1,128], index: 2, kind: input, shape index: {}]
  %s3 = inlined_call_operand.hbm [shape: bf16[512,128], index: 3, kind: output, shape index: {}]
  %s4 = sld [smem:[#allocation0]]
  $region61: #{tpu_custom_call.1} parent=0
    _
  %s6 = ssub.s32 1, %s4
  %s7 = scalar_select 0, %s6, %s4
  $region1: #{tpu_custom_call.1} parent=0
    #allocation3 [shape = 'u8[262144]{0}', space=vmem, size = 0x40000, scoped, tag = 'input window, operand 0']
    #allocation4 [shape = 's32[2]{0}', space=sflag, size = 0x8, scoped, tag = 'scoped memory for tpu_custom_call.1']
    #allocation5 [shape = 's32[2]{0}', space=sflag, size = 0x8, scoped, tag = 'scoped memory for tpu_custom_call.1']
    #allocation6 [shape = 'u8[65536]{0}', space=vmem, size = 0x10000, scoped, tag = 'input window, operand 1, single buffered']
    #allocation7 [shape = 's32[1]{0}', space=sflag, size = 0x4, scoped, tag = 'scoped memory for tpu_custom_call.1']
    #allocation8 [shape = 'u8[131072]{0}', space=vmem, size = 0x20000, scoped, tag = 'output window, operand 0']
    %8 = vsyncpa [#allocation4], 0
    %s9 = scalar_lea.sflag [#allocation4], 1
    %10 = vsyncpa %s9, 0
    %11 = vsyncpa [#allocation7], 0
    %12 = vsyncpa [#allocation5], 0
    %s13 = scalar_lea.sflag [#allocation5], 1
    %14 = vsyncpa %s13, 0
    loop: start=0, step=1, limit=4
    $region2: #{tpu_custom_call.1} parent=1 // loop_pre_header
      _
    $region3: #{tpu_custom_call.1} parent=1 // loop_header
      %s16 = sphi 0, %s20
      %p17 = scmp.ge.s32.totalorder %s16, 4
      %s23 = sphi 0, %s35
      %s24 = sphi 0, %s31
      %s25 = sphi 0, %s23
      %s26 = sphi 0, %s24
      %s27 = sphi 0, %s25
      %s28 = sphi 0, %s26
      %s40 = sphi 0, %s42
      %s43 = sphi 0, %s40
      %s44 = sphi 0, %s43
      %s60 = sphi 0, %s44
      %s66 = sphi 0, %s68
      %s69 = sphi 0, %s66
      %s70 = sphi 0, %s69
      %s86 = sphi 0, %s70
      %s90 = sphi 0, %s90
      %s92 = sphi 0, %s90
      %s93 = sphi 0, %s92
      %s107 = sphi 0, %s93
      %s113 = sphi 0, %s115
      %s116 = sphi 0, %s113
      %s117 = sphi 0, %s116
      %s133 = sphi 0, %s117
    $region4: #{tpu_custom_call.1} parent=1 // loop_header_branch
      %19 = sbr.rel (%p17) target = $region8
    $region5: #{tpu_custom_call.1} parent=1 // loop_body
      %s21 = ssub.s32 %s16, 1
      %s22 = ssub.s32 %s16, 2
      %s29 = sadd.s32 1, %s24
      %p30 = scmp.ge.s32.totalorder %s29, 1
      %s31 = scalar_select %p30, 0, %s29
      %s32 = sadd.s32 1, %s23
      %s33 = scalar_select %p30, %s32, %s23
      %p34 = scmp.ge.s32.totalorder %s33, 2
      %s35 = scalar_select %p34, 0, %s33
      %s36 = ssub.s32 %s23, %s35
      %s37 = ssub.s32 %s24, %s31
      %s38 = sor.u32 %s36, %s37
      %p39 = scmp.eq.s32.totalorder %s38, 0
      %s41 = sadd.s32 %s40, 1
      %s42 = scalar_select %p39, %s40, %s41
      %p45 = pneg %p39
      %p46 = scmp.eq.s32.totalorder %s16, 1
      %p47 = por %p45, %p46
      %p48 = scmp.ne.s32.totalorder %s40, %s43
      %p49 = scmp.eq.s32.totalorder %s16, 0
      %p50 = por %p48, %p49
      %p51 = scmp.ne.s32.totalorder %s40, %s43
      %p52 = scmp.eq.s32.totalorder %s21, 1
      %p53 = por %p51, %p52
      %p54 = scmp.ne.s32.totalorder %s43, %s44
      %p55 = scmp.eq.s32.totalorder %s21, 0
      %p56 = por %p54, %p55
      %p57 = scmp.ne.s32.totalorder %s43, %s44
      %p58 = scmp.eq.s32.totalorder %s22, 1
      %p59 = por %p57, %p58
      %p61 = scmp.ne.s32.totalorder %s44, %s60
      %p62 = scmp.eq.s32.totalorder %s22, 0
      %p63 = por %p61, %p62
      %s64 = ssub.s32 %s24, %s31
      %p65 = scmp.eq.s32.totalorder %s64, 0
      %s67 = sadd.s32 %s66, 1
      %s68 = scalar_select %p65, %s66, %s67
      %p71 = pneg %p65
      %p72 = scmp.eq.s32.totalorder %s16, 1
      %p73 = por %p71, %p72
      %p74 = scmp.ne.s32.totalorder %s66, %s69
      %p75 = scmp.eq.s32.totalorder %s16, 0
      %p76 = por %p74, %p75
      %p77 = scmp.ne.s32.totalorder %s66, %s69
      %p78 = scmp.eq.s32.totalorder %s21, 1
      %p79 = por %p77, %p78
      %p80 = scmp.ne.s32.totalorder %s69, %s70
      %p81 = scmp.eq.s32.totalorder %s21, 0
      %p82 = por %p80, %p81
      %p83 = scmp.ne.s32.totalorder %s69, %s70
      %p84 = scmp.eq.s32.totalorder %s22, 1
      %p85 = por %p83, %p84
      %p87 = scmp.ne.s32.totalorder %s70, %s86
      %p88 = scmp.eq.s32.totalorder %s22, 0
      %p89 = por %p87, %p88
      %s91 = sadd.s32 %s90, 1
      %p94 = scmp.eq.s32.totalorder %s16, 1
      %p95 = scmp.ne.s32.totalorder %s90, %s92
      %p96 = scmp.eq.s32.totalorder %s16, 0
      %p97 = por %p95, %p96
      %p98 = scmp.ne.s32.totalorder %s90, %s92
      %p99 = scmp.eq.s32.totalorder %s21, 1
      %p100 = por %p98, %p99
      %p101 = scmp.ne.s32.totalorder %s92, %s93
      %p102 = scmp.eq.s32.totalorder %s21, 0
      %p103 = por %p101, %p102
      %p104 = scmp.ne.s32.totalorder %s92, %s93
      %p105 = scmp.eq.s32.totalorder %s22, 1
      %p106 = por %p104, %p105
      %p108 = scmp.ne.s32.totalorder %s93, %s107
      %p109 = scmp.eq.s32.totalorder %s22, 0
      %p110 = por %p108, %p109
      %s111 = ssub.s32 %s23, %s35
      %p112 = scmp.eq.s32.totalorder %s111, 0
      %s114 = sadd.s32 %s113, 1
      %s115 = scalar_select %p112, %s113, %s114
      %p118 = pneg %p112
      %p119 = scmp.eq.s32.totalorder %s16, 1
      %p120 = por %p118, %p119
      %p121 = scmp.ne.s32.totalorder %s113, %s116
      %p122 = scmp.eq.s32.totalorder %s16, 0
      %p123 = por %p121, %p122
      %p124 = scmp.ne.s32.totalorder %s113, %s116
      %p125 = scmp.eq.s32.totalorder %s21, 1
      %p126 = por %p124, %p125
      %p127 = scmp.ne.s32.totalorder %s116, %s117
      %p128 = scmp.eq.s32.totalorder %s21, 0
      %p129 = por %p127, %p128
      %p130 = scmp.ne.s32.totalorder %s116, %s117
      %p131 = scmp.eq.s32.totalorder %s22, 1
      %p132 = por %p130, %p131
      %p134 = scmp.ne.s32.totalorder %s117, %s133
      %p135 = scmp.eq.s32.totalorder %s22, 0
      %p136 = por %p134, %p135
      %p137 = scmp.le.s32.totalorder 1, %s16
      %p138 = scmp.lt.s32.totalorder %s16, 3
      %p139 = pnand %p137, %p138
      %p140 = pneg %p139
      // Predicated region
      $region9: #{tpu_custom_call.1} parent=5 // pred_check
        _
      $region10: #{tpu_custom_call.1} parent=5 // pred_check_branch
        %142 = sbr.rel (%p139) target = $region12
      $region11: #{tpu_custom_call.1} parent=5 // pred_region
        %s143 = ssub.s32 %s16, 1
        // Predicated region
        $region13: #{tpu_custom_call.1} parent=11 // pred_check
          %p144 = pneg %p82
        $region14: #{tpu_custom_call.1} parent=11 // pred_check_branch
          %146 = sbr.rel (%p144) target = $region16
        $region15: #{tpu_custom_call.1} parent=11 // pred_region
          %s147 = smul.u32 16, %s26
          %s149 = ssub.s32 2048, 2048
          %150 = vsyncadd [#allocation7], %s149
          %s151 = smul.addr %s147, 128
          %s152 = scalar_lea.hbm %s1, %s151
          %s153 = sshll.u32 [#allocation6], 4
          %s154 = int_to_ptr.vmem [resolvable:$true] %s153
          %159 = dma.hbm_to_vmem [thread:$0]  %s152, 2048, %s154, [#allocation7], 128, 128, 8
        $region16: #{tpu_custom_call.1} parent=11 // pred_fallthru
          _
        // Predicated region
        $region17: #{tpu_custom_call.1} parent=11 // pred_check
          %p160 = pneg %p103
        $region18: #{tpu_custom_call.1} parent=11 // pred_check_branch
          %162 = sbr.rel (%p160) target = $region20
        $region19: #{tpu_custom_call.1} parent=11 // pred_region
          _
        $region20: #{tpu_custom_call.1} parent=11 // pred_fallthru
          _
      $region12: #{tpu_custom_call.1} parent=5 // pred_fallthru
        _
      %p163 = scmp.lt.s32.totalorder %s16, 2
      // Predicated region
      $region21: #{tpu_custom_call.1} parent=5 // pred_check
        %p164 = pneg %p163
      $region22: #{tpu_custom_call.1} parent=5 // pred_check_branch
        %166 = sbr.rel (%p164) target = $region24
      $region23: #{tpu_custom_call.1} parent=5 // pred_region
        // Predicated region
        $region25: #{tpu_custom_call.1} parent=23 // pred_check
          %p167 = pneg %p50
        $region26: #{tpu_custom_call.1} parent=23 // pred_check_branch
          %169 = sbr.rel (%p167) target = $region28
        $region27: #{tpu_custom_call.1} parent=23 // pred_region
          %s170 = sand.u32 %s40, 1
          %s171 = scalar_lea.sflag [#allocation4], %s170
          %s172 = sand.u32 %s40, 1
          %s173 = smul.addr %s172, 256
          %s174 = scalar_lea.vmem [#allocation3], %s173
          %s175 = smul.u32 32, %s23
          %s177 = ssub.s32 4096, 4096
          %178 = vsyncadd %s171, %s177
          %s179 = sadd.s32 %s24, %s175
          %s180 = smul.addr %s179, 128
          %s181 = scalar_lea.hbm %s0, %s180
          %s182 = sshll.u32 %s174, 4
          %s183 = int_to_ptr.vmem [resolvable:$true] %s182
          %188 = dma.hbm_to_vmem [thread:$0]  %s181, 4096, %s183, %s171, 128, 128, 8
        $region28: #{tpu_custom_call.1} parent=23 // pred_fallthru
          _
      $region24: #{tpu_custom_call.1} parent=5 // pred_fallthru
        _
      %p189 = scmp.le.s32.totalorder 1, %s16
      %p190 = scmp.lt.s32.totalorder %s16, 3
      %p191 = pnand %p189, %p190
      %p192 = pneg %p191
      // Predicated region
      $region29: #{tpu_custom_call.1} parent=5 // pred_check
        _
      $region30: #{tpu_custom_call.1} parent=5 // pred_check_branch
        %194 = sbr.rel (%p191) target = $region32
      $region31: #{tpu_custom_call.1} parent=5 // pred_region
        %s195 = ssub.s32 %s16, 1
        %s196 = sand.u32 %s43, 1
        %s197 = scalar_lea.sflag [#allocation4], %s196
        %s198 = sand.u32 %s43, 1
        %s199 = smul.addr %s198, 256
        %s200 = scalar_lea.vmem [#allocation3], %s199
        // Predicated region
        $region33: #{tpu_custom_call.1} parent=31 // pred_check
          %p201 = pneg %p56
        $region34: #{tpu_custom_call.1} parent=31 // pred_check_branch
          %203 = sbr.rel (%p201) target = $region36
        $region35: #{tpu_custom_call.1} parent=31 // pred_region
          %204 = dma.done %s197, 4096
        $region36: #{tpu_custom_call.1} parent=31 // pred_fallthru
          _
        // Predicated region
        $region37: #{tpu_custom_call.1} parent=31 // pred_check
          %p205 = pneg %p82
        $region38: #{tpu_custom_call.1} parent=31 // pred_check_branch
          %207 = sbr.rel (%p205) target = $region40
        $region39: #{tpu_custom_call.1} parent=31 // pred_region
          %208 = dma.done [#allocation7], 2048
        $region40: #{tpu_custom_call.1} parent=31 // pred_fallthru
          _
        %s209 = sand.u32 %s43, 1
        %s210 = scalar_lea.sflag [#allocation4], %s209
        %s211 = sand.u32 %s43, 1
        %s212 = smul.addr %s211, 256
        %s213 = scalar_lea.vmem [#allocation3], %s212
        %p214 = pneg %p56
        %p215 = pneg %p53
        %p216 = pneg %p82
        %p217 = pneg %p79
        %p218 = pneg %p103
        %p219 = pneg %p100
        %p220 = pneg %p129
        %p221 = pneg %p126
        %s222 = sand.u32 %s116, 1
        %s223 = scalar_lea.sflag [#allocation5], %s222
        %s224 = sand.u32 %s116, 1
        %s225 = smul.addr %s224, 128
        %s226 = scalar_lea.vmem [#allocation8], %s225
        %s227 = smul.u32 32, %s25
        %s228 = smul.u32 16, %s26
        %s229 = smul.u32 32, %s25
        %p230 = scmp.eq.s32.totalorder %s26, 0
        // Predicated region
        $region41: #{tpu_custom_call.1} parent=31 // pred_check
          %p231 = pneg %p230
        $region42: #{tpu_custom_call.1} parent=31 // pred_check_branch
          %233 = sbr.rel (%p231) target = $region44
        $region43: #{tpu_custom_call.1} parent=31 // pred_region
          %234 = vst [vmem:[#allocation2] sm:$0xff] 0.0
          %235 = vst [vmem:[#allocation2 + $0x8] sm:$0xff] 0.0
          %236 = vst [vmem:[#allocation2 + $0x10] sm:$0xff] 0.0
          %237 = vst [vmem:[#allocation2 + $0x18] sm:$0xff] 0.0
          %238 = vst [vmem:[#allocation2 + $0x20] sm:$0xff] 0.0
          %239 = vst [vmem:[#allocation2 + $0x28] sm:$0xff] 0.0
          %240 = vst [vmem:[#allocation2 + $0x30] sm:$0xff] 0.0
          %241 = vst [vmem:[#allocation2 + $0x38] sm:$0xff] 0.0
          %242 = vst [vmem:[#allocation2 + $0x40] sm:$0xff] 0.0
          %243 = vst [vmem:[#allocation2 + $0x48] sm:$0xff] 0.0
          %244 = vst [vmem:[#allocation2 + $0x50] sm:$0xff] 0.0
          %245 = vst [vmem:[#allocation2 + $0x58] sm:$0xff] 0.0
          %246 = vst [vmem:[#allocation2 + $0x60] sm:$0xff] 0.0
          %247 = vst [vmem:[#allocation2 + $0x68] sm:$0xff] 0.0
          %248 = vst [vmem:[#allocation2 + $0x70] sm:$0xff] 0.0
          %249 = vst [vmem:[#allocation2 + $0x78] sm:$0xff] 0.0
          %250 = vst [vmem:[#allocation2 + $0x80] sm:$0xff] 0.0
          %251 = vst [vmem:[#allocation2 + $0x88] sm:$0xff] 0.0
          %252 = vst [vmem:[#allocation2 + $0x90] sm:$0xff] 0.0
          %253 = vst [vmem:[#allocation2 + $0x98] sm:$0xff] 0.0
          %254 = vst [vmem:[#allocation2 + $0xa0] sm:$0xff] 0.0
          %255 = vst [vmem:[#allocation2 + $0xa8] sm:$0xff] 0.0
          %256 = vst [vmem:[#allocation2 + $0xb0] sm:$0xff] 0.0
          %257 = vst [vmem:[#allocation2 + $0xb8] sm:$0xff] 0.0
          %258 = vst [vmem:[#allocation2 + $0xc0] sm:$0xff] 0.0
          %259 = vst [vmem:[#allocation2 + $0xc8] sm:$0xff] 0.0
          %260 = vst [vmem:[#allocation2 + $0xd0] sm:$0xff] 0.0
          %261 = vst [vmem:[#allocation2 + $0xd8] sm:$0xff] 0.0
          %262 = vst [vmem:[#allocation2 + $0xe0] sm:$0xff] 0.0
          %263 = vst [vmem:[#allocation2 + $0xe8] sm:$0xff] 0.0
          %264 = vst [vmem:[#allocation2 + $0xf0] sm:$0xff] 0.0
          %265 = vst [vmem:[#allocation2 + $0xf8] sm:$0xff] 0.0
        $region44: #{tpu_custom_call.1} parent=31 // pred_fallthru
          _
        %v266 = vld [vmem:[#allocation2] sm:$0xff]
        %v267 = vld [vmem:[#allocation2 + $0x8] sm:$0xff]
        %v268 = vld [vmem:[#allocation2 + $0x10] sm:$0xff]
        %v269 = vld [vmem:[#allocation2 + $0x18] sm:$0xff]
        %v270 = vld [vmem:[#allocation2 + $0x20] sm:$0xff]
        %v271 = vld [vmem:[#allocation2 + $0x28] sm:$0xff]
        %v272 = vld [vmem:[#allocation2 + $0x30] sm:$0xff]
        %v273 = vld [vmem:[#allocation2 + $0x38] sm:$0xff]
        %v274 = vld [vmem:[#allocation2 + $0x40] sm:$0xff]
        %v275 = vld [vmem:[#allocation2 + $0x48] sm:$0xff]
        %v276 = vld [vmem:[#allocation2 + $0x50] sm:$0xff]
        %v277 = vld [vmem:[#allocation2 + $0x58] sm:$0xff]
        %v278 = vld [vmem:[#allocation2 + $0x60] sm:$0xff]
        %v279 = vld [vmem:[#allocation2 + $0x68] sm:$0xff]
        %v280 = vld [vmem:[#allocation2 + $0x70] sm:$0xff]
        %v281 = vld [vmem:[#allocation2 + $0x78] sm:$0xff]
        %v282 = vld [vmem:[#allocation2 + $0x80] sm:$0xff]
        %v283 = vld [vmem:[#allocation2 + $0x88] sm:$0xff]
        %v284 = vld [vmem:[#allocation2 + $0x90] sm:$0xff]
        %v285 = vld [vmem:[#allocation2 + $0x98] sm:$0xff]
        %v286 = vld [vmem:[#allocation2 + $0xa0] sm:$0xff]
        %v287 = vld [vmem:[#allocation2 + $0xa8] sm:$0xff]
        %v288 = vld [vmem:[#allocation2 + $0xb0] sm:$0xff]
        %v289 = vld [vmem:[#allocation2 + $0xb8] sm:$0xff]
        %v290 = vld [vmem:[#allocation2 + $0xc0] sm:$0xff]
        %v291 = vld [vmem:[#allocation2 + $0xc8] sm:$0xff]
        %v292 = vld [vmem:[#allocation2 + $0xd0] sm:$0xff]
        %v293 = vld [vmem:[#allocation2 + $0xd8] sm:$0xff]
        %v294 = vld [vmem:[#allocation2 + $0xe0] sm:$0xff]
        %v295 = vld [vmem:[#allocation2 + $0xe8] sm:$0xff]
        %v296 = vld [vmem:[#allocation2 + $0xf0] sm:$0xff]
        %v297 = vld [vmem:[#allocation2 + $0xf8] sm:$0xff]
        %v298 = vld [vmem:[%s200] sm:$0xff]
        %v299 = vld [vmem:[%s200 + $0x8] sm:$0xff]
        %v300 = vld [vmem:[%s200 + $0x10] sm:$0xff]
        %v301 = vld [vmem:[%s200 + $0x18] sm:$0xff]
        %v302 = vld [vmem:[%s200 + $0x20] sm:$0xff]
        %v303 = vld [vmem:[%s200 + $0x28] sm:$0xff]
        %v304 = vld [vmem:[%s200 + $0x30] sm:$0xff]
        %v305 = vld [vmem:[%s200 + $0x38] sm:$0xff]
        %v306 = vld [vmem:[%s200 + $0x40] sm:$0xff]
        %v307 = vld [vmem:[%s200 + $0x48] sm:$0xff]
        %v308 = vld [vmem:[%s200 + $0x50] sm:$0xff]
        %v309 = vld [vmem:[%s200 + $0x58] sm:$0xff]
        %v310 = vld [vmem:[%s200 + $0x60] sm:$0xff]
        %v311 = vld [vmem:[%s200 + $0x68] sm:$0xff]
        %v312 = vld [vmem:[%s200 + $0x70] sm:$0xff]
        %v313 = vld [vmem:[%s200 + $0x78] sm:$0xff]
        %v314 = vld [vmem:[%s200 + $0x80] sm:$0xff]
        %v315 = vld [vmem:[%s200 + $0x88] sm:$0xff]
        %v316 = vld [vmem:[%s200 + $0x90] sm:$0xff]
        %v317 = vld [vmem:[%s200 + $0x98] sm:$0xff]
        %v318 = vld [vmem:[%s200 + $0xa0] sm:$0xff]
        %v319 = vld [vmem:[%s200 + $0xa8] sm:$0xff]
        %v320 = vld [vmem:[%s200 + $0xb0] sm:$0xff]
        %v321 = vld [vmem:[%s200 + $0xb8] sm:$0xff]
        %v322 = vld [vmem:[%s200 + $0xc0] sm:$0xff]
        %v323 = vld [vmem:[%s200 + $0xc8] sm:$0xff]
        %v324 = vld [vmem:[%s200 + $0xd0] sm:$0xff]
        %v325 = vld [vmem:[%s200 + $0xd8] sm:$0xff]
        %v326 = vld [vmem:[%s200 + $0xe0] sm:$0xff]
        %v327 = vld [vmem:[%s200 + $0xe8] sm:$0xff]
        %v328 = vld [vmem:[%s200 + $0xf0] sm:$0xff]
        %v329 = vld [vmem:[%s200 + $0xf8] sm:$0xff]
        %v330 = vld [vmem:[#allocation6] sm:$0xff]
        %v331 = vld [vmem:[#allocation6 + $0x8] sm:$0xff]
        %v332 = vld [vmem:[#allocation6 + $0x10] sm:$0xff]
        %v333 = vld [vmem:[#allocation6 + $0x18] sm:$0xff]
        %v334 = vld [vmem:[#allocation6 + $0x20] sm:$0xff]
        %v335 = vld [vmem:[#allocation6 + $0x28] sm:$0xff]
        %v336 = vld [vmem:[#allocation6 + $0x30] sm:$0xff]
        %v337 = vld [vmem:[#allocation6 + $0x38] sm:$0xff]
        %v338 = vld [vmem:[#allocation6 + $0x40] sm:$0xff]
        %v339 = vld [vmem:[#allocation6 + $0x48] sm:$0xff]
        %v340 = vld [vmem:[#allocation6 + $0x50] sm:$0xff]
        %v341 = vld [vmem:[#allocation6 + $0x58] sm:$0xff]
        %v342 = vld [vmem:[#allocation6 + $0x60] sm:$0xff]
        %v343 = vld [vmem:[#allocation6 + $0x68] sm:$0xff]
        %v344 = vld [vmem:[#allocation6 + $0x70] sm:$0xff]
        %v345 = vld [vmem:[#allocation6 + $0x78] sm:$0xff]
        %346 = vmatprep.subr.mxu0 0.0
        %347 = vmatpush1.msra.mxu0 %v330
        %348 = vmatprep.subr.mxu0 0.0
        %349 = vmatpush1.msra.mxu0 %v331
        %350 = vmatprep.subr.mxu0 0.0
        %351 = vmatpush1.msra.mxu0 %v332
        %352 = vmatprep.subr.mxu0 0.0
        %353 = vmatpush1.msra.mxu0 %v333
        %354 = vmatprep.subr.mxu0 0.0
        %355 = vmatpush1.msra.mxu0 %v334
        %356 = vmatprep.subr.mxu0 0.0
        %357 = vmatpush1.msra.mxu0 %v335
        %358 = vmatprep.subr.mxu0 0.0
        %359 = vmatpush1.msra.mxu0 %v336
        %360 = vmatprep.subr.mxu0 0.0
        %361 = vmatpush1.msra.mxu0 %v337
        %362 = vmatprep.subr.mxu0 0.0
        %363 = vmatpush1.msra.mxu0 %v338
        %364 = vmatprep.subr.mxu0 0.0
        %365 = vmatpush1.msra.mxu0 %v339
        %366 = vmatprep.subr.mxu0 0.0
        %367 = vmatpush1.msra.mxu0 %v340
        %368 = vmatprep.subr.mxu0 0.0
        %369 = vmatpush1.msra.mxu0 %v341
        %370 = vmatprep.subr.mxu0 0.0
        %371 = vmatpush1.msra.mxu0 %v342
        %372 = vmatprep.subr.mxu0 0.0
        %373 = vmatpush1.msra.mxu0 %v343
        %374 = vmatprep.subr.mxu0 0.0
        %375 = vmatpush1.msra.mxu0 %v344
        %376 = vmatprep.subr.mxu0 0.0
        %377 = vmatpush1.msra.mxu0 %v345
        %378 = vmatprep.subr.mxu0 0.0
        %379 = vmatpush1.msra.mxu0 0.0
        %380 = vmatprep.subr.mxu0 0.0
        %381 = vmatpush1.msra.mxu0 0.0
        %382 = vmatprep.subr.mxu0 0.0
        %383 = vmatpush1.msra.mxu0 0.0
        %384 = vmatprep.subr.mxu0 0.0
        %385 = vmatpush1.msra.mxu0 0.0
        %386 = vmatprep.subr.mxu0 0.0
        %387 = vmatpush1.msra.mxu0 0.0
        %388 = vmatprep.subr.mxu0 0.0
        %389 = vmatpush1.msra.mxu0 0.0
        %390 = vmatprep.subr.mxu0 0.0
        %391 = vmatpush1.msra.mxu0 0.0
        %392 = vmatprep.subr.mxu0 0.0
        %393 = vmatpush1.msra.mxu0 0.0
        %394 = vmatprep.subr.mxu0 0.0
        %395 = vmatpush1.msra.mxu0 0.0
        %396 = vmatprep.subr.mxu0 0.0
        %397 = vmatpush1.msra.mxu0 0.0
        %398 = vmatprep.subr.mxu0 0.0
        %399 = vmatpush1.msra.mxu0 0.0
        %400 = vmatprep.subr.mxu0 0.0
        %401 = vmatpush1.msra.mxu0 0.0
        %402 = vmatprep.subr.mxu0 0.0
        %403 = vmatpush1.msra.mxu0 0.0
        %404 = vmatprep.subr.mxu0 0.0
        %405 = vmatpush1.msra.mxu0 0.0
        %406 = vmatprep.subr.mxu0 0.0
        %407 = vmatpush1.msra.mxu0 0.0
        %408 = vmatprep.subr.mxu0 0.0
        %409 = vmatpush1.msra.mxu0 0.0
        %410 = vmatprep.mubr.f32.mxu0 0.0
        %411 = vmatmul.mubr.f32.gmra.mrb[0].mxu0 %v298
        %v412 = vpop.f32.mrb[0].mxu0
        %v413 = vadd.f32 0.0, %v412
        %v414 = vpop.f32.mrb[0].mxu0
        %415 = vmatprep.mubr.f32.mxu0 0.0
        %416 = vmatmul.mubr.f32.gmra.mrb[0].mxu0 %v299
        %v417 = vpop.f32.mrb[0].mxu0
        %v418 = vadd.f32 0.0, %v417
        %v419 = vpop.f32.mrb[0].mxu0
        %420 = vmatprep.mubr.f32.mxu0 0.0
        %421 = vmatmul.mubr.f32.gmra.mrb[0].mxu0 %v300
        %v422 = vpop.f32.mrb[0].mxu0
        %v423 = vadd.f32 0.0, %v422
        %v424 = vpop.f32.mrb[0].mxu0
        %425 = vmatprep.mubr.f32.mxu0 0.0
        %426 = vmatmul.mubr.f32.gmra.mrb[0].mxu0 %v301
        %v427 = vpop.f32.mrb[0].mxu0
        %v428 = vadd.f32 0.0, %v427
        %v429 = vpop.f32.mrb[0].mxu0
        %430 = vmatprep.mubr.f32.mxu0 0.0
        %431 = vmatmul.mubr.f32.gmra.mrb[0].mxu0 %v302
        %v432 = vpop.f32.mrb[0].mxu0
        %v433 = vadd.f32 0.0, %v432
        %v434 = vpop.f32.mrb[0].mxu0
        %435 = vmatprep.mubr.f32.mxu0 0.0
        %436 = vmatmul.mubr.f32.gmra.mrb[0].mxu0 %v303
        %v437 = vpop.f32.mrb[0].mxu0
        %v438 = vadd.f32 0.0, %v437
        %v439 = vpop.f32.mrb[0].mxu0
        %440 = vmatprep.mubr.f32.mxu0 0.0
        %441 = vmatmul.mubr.f32.gmra.mrb[0].mxu0 %v304
        %v442 = vpop.f32.mrb[0].mxu0
        %v443 = vadd.f32 0.0, %v442
        %v444 = vpop.f32.mrb[0].mxu0
        %445 = vmatprep.mubr.f32.mxu0 0.0
        %446 = vmatmul.mubr.f32.gmra.mrb[0].mxu0 %v305
        %v447 = vpop.f32.mrb[0].mxu0
        %v448 = vadd.f32 0.0, %v447
        %v449 = vpop.f32.mrb[0].mxu0
        %450 = vmatprep.mubr.f32.mxu0 0.0
        %451 = vmatmul.mubr.f32.gmra.mrb[0].mxu0 %v306
        %v452 = vpop.f32.mrb[0].mxu0
        %v453 = vadd.f32 0.0, %v452
        %v454 = vpop.f32.mrb[0].mxu0
        %455 = vmatprep.mubr.f32.mxu0 0.0
        %456 = vmatmul.mubr.f32.gmra.mrb[0].mxu0 %v307
        %v457 = vpop.f32.mrb[0].mxu0
        %v458 = vadd.f32 0.0, %v457
        %v459 = vpop.f32.mrb[0].mxu0
        %460 = vmatprep.mubr.f32.mxu0 0.0
        %461 = vmatmul.mubr.f32.gmra.mrb[0].mxu0 %v308
        %v462 = vpop.f32.mrb[0].mxu0
        %v463 = vadd.f32 0.0, %v462
        %v464 = vpop.f32.mrb[0].mxu0
        %465 = vmatprep.mubr.f32.mxu0 0.0
        %466 = vmatmul.mubr.f32.gmra.mrb[0].mxu0 %v309
        %v467 = vpop.f32.mrb[0].mxu0
        %v468 = vadd.f32 0.0, %v467
        %v469 = vpop.f32.mrb[0].mxu0
        %470 = vmatprep.mubr.f32.mxu0 0.0
        %471 = vmatmul.mubr.f32.gmra.mrb[0].mxu0 %v310
        %v472 = vpop.f32.mrb[0].mxu0
        %v473 = vadd.f32 0.0, %v472
        %v474 = vpop.f32.mrb[0].mxu0
        %475 = vmatprep.mubr.f32.mxu0 0.0
        %476 = vmatmul.mubr.f32.gmra.mrb[0].mxu0 %v311
        %v477 = vpop.f32.mrb[0].mxu0
        %v478 = vadd.f32 0.0, %v477
        %v479 = vpop.f32.mrb[0].mxu0
        %480 = vmatprep.mubr.f32.mxu0 0.0
        %481 = vmatmul.mubr.f32.gmra.mrb[0].mxu0 %v312
        %v482 = vpop.f32.mrb[0].mxu0
        %v483 = vadd.f32 0.0, %v482
        %v484 = vpop.f32.mrb[0].mxu0
        %485 = vmatprep.mubr.f32.mxu0 0.0
        %486 = vmatmul.mubr.f32.gmra.mrb[0].mxu0 %v313
        %v487 = vpop.f32.mrb[0].mxu0
        %v488 = vadd.f32 0.0, %v487
        %v489 = vpop.f32.mrb[0].mxu0
        %490 = vmatprep.mubr.f32.mxu0 0.0
        %491 = vmatmul.mubr.f32.gmra.mrb[0].mxu0 %v314
        %v492 = vpop.f32.mrb[0].mxu0
        %v493 = vadd.f32 0.0, %v492
        %v494 = vpop.f32.mrb[0].mxu0
        %495 = vmatprep.mubr.f32.mxu0 0.0
        %496 = vmatmul.mubr.f32.gmra.mrb[0].mxu0 %v315
        %v497 = vpop.f32.mrb[0].mxu0
        %v498 = vadd.f32 0.0, %v497
        %v499 = vpop.f32.mrb[0].mxu0
        %500 = vmatprep.mubr.f32.mxu0 0.0
        %501 = vmatmul.mubr.f32.gmra.mrb[0].mxu0 %v316
        %v502 = vpop.f32.mrb[0].mxu0
        %v503 = vadd.f32 0.0, %v502
        %v504 = vpop.f32.mrb[0].mxu0
        %505 = vmatprep.mubr.f32.mxu0 0.0
        %506 = vmatmul.mubr.f32.gmra.mrb[0].mxu0 %v317
        %v507 = vpop.f32.mrb[0].mxu0
        %v508 = vadd.f32 0.0, %v507
        %v509 = vpop.f32.mrb[0].mxu0
        %510 = vmatprep.mubr.f32.mxu0 0.0
        %511 = vmatmul.mubr.f32.gmra.mrb[0].mxu0 %v318
        %v512 = vpop.f32.mrb[0].mxu0
        %v513 = vadd.f32 0.0, %v512
        %v514 = vpop.f32.mrb[0].mxu0
        %515 = vmatprep.mubr.f32.mxu0 0.0
        %516 = vmatmul.mubr.f32.gmra.mrb[0].mxu0 %v319
        %v517 = vpop.f32.mrb[0].mxu0
        %v518 = vadd.f32 0.0, %v517
        %v519 = vpop.f32.mrb[0].mxu0
        %520 = vmatprep.mubr.f32.mxu0 0.0
        %521 = vmatmul.mubr.f32.gmra.mrb[0].mxu0 %v320
        %v522 = vpop.f32.mrb[0].mxu0
        %v523 = vadd.f32 0.0, %v522
        %v524 = vpop.f32.mrb[0].mxu0
        %525 = vmatprep.mubr.f32.mxu0 0.0
        %526 = vmatmul.mubr.f32.gmra.mrb[0].mxu0 %v321
        %v527 = vpop.f32.mrb[0].mxu0
        %v528 = vadd.f32 0.0, %v527
        %v529 = vpop.f32.mrb[0].mxu0
        %530 = vmatprep.mubr.f32.mxu0 0.0
        %531 = vmatmul.mubr.f32.gmra.mrb[0].mxu0 %v322
        %v532 = vpop.f32.mrb[0].mxu0
        %v533 = vadd.f32 0.0, %v532
        %v534 = vpop.f32.mrb[0].mxu0
        %535 = vmatprep.mubr.f32.mxu0 0.0
        %536 = vmatmul.mubr.f32.gmra.mrb[0].mxu0 %v323
        %v537 = vpop.f32.mrb[0].mxu0
        %v538 = vadd.f32 0.0, %v537
        %v539 = vpop.f32.mrb[0].mxu0
        %540 = vmatprep.mubr.f32.mxu0 0.0
        %541 = vmatmul.mubr.f32.gmra.mrb[0].mxu0 %v324
        %v542 = vpop.f32.mrb[0].mxu0
        %v543 = vadd.f32 0.0, %v542
        %v544 = vpop.f32.mrb[0].mxu0
        %545 = vmatprep.mubr.f32.mxu0 0.0
        %546 = vmatmul.mubr.f32.gmra.mrb[0].mxu0 %v325
        %v547 = vpop.f32.mrb[0].mxu0
        %v548 = vadd.f32 0.0, %v547
        %v549 = vpop.f32.mrb[0].mxu0
        %550 = vmatprep.mubr.f32.mxu0 0.0
        %551 = vmatmul.mubr.f32.gmra.mrb[0].mxu0 %v326
        %v552 = vpop.f32.mrb[0].mxu0
        %v553 = vadd.f32 0.0, %v552
        %v554 = vpop.f32.mrb[0].mxu0
        %555 = vmatprep.mubr.f32.mxu0 0.0
        %556 = vmatmul.mubr.f32.gmra.mrb[0].mxu0 %v327
        %v557 = vpop.f32.mrb[0].mxu0
        %v558 = vadd.f32 0.0, %v557
        %v559 = vpop.f32.mrb[0].mxu0
        %560 = vmatprep.mubr.f32.mxu0 0.0
        %561 = vmatmul.mubr.f32.gmra.mrb[0].mxu0 %v328
        %v562 = vpop.f32.mrb[0].mxu0
        %v563 = vadd.f32 0.0, %v562
        %v564 = vpop.f32.mrb[0].mxu0
        %565 = vmatprep.mubr.f32.mxu0 0.0
        %566 = vmatmul.mubr.f32.gmra.mrb[0].mxu0 %v329
        %v567 = vpop.f32.mrb[0].mxu0
        %v568 = vadd.f32 0.0, %v567
        %v569 = vpop.f32.mrb[0].mxu0
        %570 = vdwg.mxu0
        %v571 = vadd.f32 %v266, %v413
        %v572 = vadd.f32 %v267, %v418
        %v573 = vadd.f32 %v268, %v423
        %v574 = vadd.f32 %v269, %v428
        %v575 = vadd.f32 %v270, %v433
        %v576 = vadd.f32 %v271, %v438
        %v577 = vadd.f32 %v272, %v443
        %v578 = vadd.f32 %v273, %v448
        %v579 = vadd.f32 %v274, %v453
        %v580 = vadd.f32 %v275, %v458
        %v581 = vadd.f32 %v276, %v463
        %v582 = vadd.f32 %v277, %v468
        %v583 = vadd.f32 %v278, %v473
        %v584 = vadd.f32 %v279, %v478
        %v585 = vadd.f32 %v280, %v483
        %v586 = vadd.f32 %v281, %v488
        %v587 = vadd.f32 %v282, %v493
        %v588 = vadd.f32 %v283, %v498
        %v589 = vadd.f32 %v284, %v503
        %v590 = vadd.f32 %v285, %v508
        %v591 = vadd.f32 %v286, %v513
        %v592 = vadd.f32 %v287, %v518
        %v593 = vadd.f32 %v288, %v523
        %v594 = vadd.f32 %v289, %v528
        %v595 = vadd.f32 %v290, %v533
        %v596 = vadd.f32 %v291, %v538
        %v597 = vadd.f32 %v292, %v543
        %v598 = vadd.f32 %v293, %v548
        %v599 = vadd.f32 %v294, %v553
        %v600 = vadd.f32 %v295, %v558
        %v601 = vadd.f32 %v296, %v563
        %v602 = vadd.f32 %v297, %v568
        %603 = vst [vmem:[#allocation2] sm:$0xff] %v571
        %604 = vst [vmem:[#allocation2 + $0x8] sm:$0xff] %v572
        %605 = vst [vmem:[#allocation2 + $0x10] sm:$0xff] %v573
        %606 = vst [vmem:[#allocation2 + $0x18] sm:$0xff] %v574
        %607 = vst [vmem:[#allocation2 + $0x20] sm:$0xff] %v575
        %608 = vst [vmem:[#allocation2 + $0x28] sm:$0xff] %v576
        %609 = vst [vmem:[#allocation2 + $0x30] sm:$0xff] %v577
        %610 = vst [vmem:[#allocation2 + $0x38] sm:$0xff] %v578
        %611 = vst [vmem:[#allocation2 + $0x40] sm:$0xff] %v579
        %612 = vst [vmem:[#allocation2 + $0x48] sm:$0xff] %v580
        %613 = vst [vmem:[#allocation2 + $0x50] sm:$0xff] %v581
        %614 = vst [vmem:[#allocation2 + $0x58] sm:$0xff] %v582
        %615 = vst [vmem:[#allocation2 + $0x60] sm:$0xff] %v583
        %616 = vst [vmem:[#allocation2 + $0x68] sm:$0xff] %v584
        %617 = vst [vmem:[#allocation2 + $0x70] sm:$0xff] %v585
        %618 = vst [vmem:[#allocation2 + $0x78] sm:$0xff] %v586
        %619 = vst [vmem:[#allocation2 + $0x80] sm:$0xff] %v587
        %620 = vst [vmem:[#allocation2 + $0x88] sm:$0xff] %v588
        %621 = vst [vmem:[#allocation2 + $0x90] sm:$0xff] %v589
        %622 = vst [vmem:[#allocation2 + $0x98] sm:$0xff] %v590
        %623 = vst [vmem:[#allocation2 + $0xa0] sm:$0xff] %v591
        %624 = vst [vmem:[#allocation2 + $0xa8] sm:$0xff] %v592
        %625 = vst [vmem:[#allocation2 + $0xb0] sm:$0xff] %v593
        %626 = vst [vmem:[#allocation2 + $0xb8] sm:$0xff] %v594
        %627 = vst [vmem:[#allocation2 + $0xc0] sm:$0xff] %v595
        %628 = vst [vmem:[#allocation2 + $0xc8] sm:$0xff] %v596
        %629 = vst [vmem:[#allocation2 + $0xd0] sm:$0xff] %v597
        %630 = vst [vmem:[#allocation2 + $0xd8] sm:$0xff] %v598
        %631 = vst [vmem:[#allocation2 + $0xe0] sm:$0xff] %v599
        %632 = vst [vmem:[#allocation2 + $0xe8] sm:$0xff] %v600
        %633 = vst [vmem:[#allocation2 + $0xf0] sm:$0xff] %v601
        %634 = vst [vmem:[#allocation2 + $0xf8] sm:$0xff] %v602
        // Predicated region
        $region45: #{tpu_custom_call.1} parent=31 // pred_check
          %p635 = pneg %p230
        $region46: #{tpu_custom_call.1} parent=31 // pred_check_branch
          %637 = sbr.rel (%p635) target = $region48
        $region47: #{tpu_custom_call.1} parent=31 // pred_region
          %v638 = vld [vmem:[#allocation2] sm:$0xff]
          %v639 = vld [vmem:[#allocation2 + $0x8] sm:$0xff]
          %v640 = vld [vmem:[#allocation2 + $0x10] sm:$0xff]
          %v641 = vld [vmem:[#allocation2 + $0x18] sm:$0xff]
          %v642 = vld [vmem:[#allocation2 + $0x20] sm:$0xff]
          %v643 = vld [vmem:[#allocation2 + $0x28] sm:$0xff]
          %v644 = vld [vmem:[#allocation2 + $0x30] sm:$0xff]
          %v645 = vld [vmem:[#allocation2 + $0x38] sm:$0xff]
          %v646 = vld [vmem:[#allocation2 + $0x40] sm:$0xff]
          %v647 = vld [vmem:[#allocation2 + $0x48] sm:$0xff]
          %v648 = vld [vmem:[#allocation2 + $0x50] sm:$0xff]
          %v649 = vld [vmem:[#allocation2 + $0x58] sm:$0xff]
          %v650 = vld [vmem:[#allocation2 + $0x60] sm:$0xff]
          %v651 = vld [vmem:[#allocation2 + $0x68] sm:$0xff]
          %v652 = vld [vmem:[#allocation2 + $0x70] sm:$0xff]
          %v653 = vld [vmem:[#allocation2 + $0x78] sm:$0xff]
          %v654 = vld [vmem:[#allocation2 + $0x80] sm:$0xff]
          %v655 = vld [vmem:[#allocation2 + $0x88] sm:$0xff]
          %v656 = vld [vmem:[#allocation2 + $0x90] sm:$0xff]
          %v657 = vld [vmem:[#allocation2 + $0x98] sm:$0xff]
          %v658 = vld [vmem:[#allocation2 + $0xa0] sm:$0xff]
          %v659 = vld [vmem:[#allocation2 + $0xa8] sm:$0xff]
          %v660 = vld [vmem:[#allocation2 + $0xb0] sm:$0xff]
          %v661 = vld [vmem:[#allocation2 + $0xb8] sm:$0xff]
          %v662 = vld [vmem:[#allocation2 + $0xc0] sm:$0xff]
          %v663 = vld [vmem:[#allocation2 + $0xc8] sm:$0xff]
          %v664 = vld [vmem:[#allocation2 + $0xd0] sm:$0xff]
          %v665 = vld [vmem:[#allocation2 + $0xd8] sm:$0xff]
          %v666 = vld [vmem:[#allocation2 + $0xe0] sm:$0xff]
          %v667 = vld [vmem:[#allocation2 + $0xe8] sm:$0xff]
          %v668 = vld [vmem:[#allocation2 + $0xf0] sm:$0xff]
          %v669 = vld [vmem:[#allocation2 + $0xf8] sm:$0xff]
          %v670 = vld [vmem:[%s2] sm:$0x1]
          %v672 = vlaneseq
          %v673 = vshrl.u32 %v672, 7
          %v674 = vsub.s32 0, %v673
          %v675 = vrot.slane %v670, %v674
          %v677 = vadd.f32 %v638, %v675
          %v678 = vadd.f32 %v639, %v675
          %v679 = vadd.f32 %v640, %v675
          %v680 = vadd.f32 %v641, %v675
          %v681 = vadd.f32 %v642, %v675
          %v682 = vadd.f32 %v643, %v675
          %v683 = vadd.f32 %v644, %v675
          %v684 = vadd.f32 %v645, %v675
          %v685 = vadd.f32 %v646, %v675
          %v686 = vadd.f32 %v647, %v675
          %v687 = vadd.f32 %v648, %v675
          %v688 = vadd.f32 %v649, %v675
          %v689 = vadd.f32 %v650, %v675
          %v690 = vadd.f32 %v651, %v675
          %v691 = vadd.f32 %v652, %v675
          %v692 = vadd.f32 %v653, %v675
          %v693 = vadd.f32 %v654, %v675
          %v694 = vadd.f32 %v655, %v675
          %v695 = vadd.f32 %v656, %v675
          %v696 = vadd.f32 %v657, %v675
          %v697 = vadd.f32 %v658, %v675
          %v698 = vadd.f32 %v659, %v675
          %v699 = vadd.f32 %v660, %v675
          %v700 = vadd.f32 %v661, %v675
          %v701 = vadd.f32 %v662, %v675
          %v702 = vadd.f32 %v663, %v675
          %v703 = vadd.f32 %v664, %v675
          %v704 = vadd.f32 %v665, %v675
          %v705 = vadd.f32 %v666, %v675
          %v706 = vadd.f32 %v667, %v675
          %v707 = vadd.f32 %v668, %v675
          %v708 = vadd.f32 %v669, %v675
          %v709 = vpack.c.bf16 %v678, %v677
          %v710 = vpack.c.bf16 %v680, %v679
          %v711 = vpack.c.bf16 %v682, %v681
          %v712 = vpack.c.bf16 %v684, %v683
          %v713 = vpack.c.bf16 %v686, %v685
          %v714 = vpack.c.bf16 %v688, %v687
          %v715 = vpack.c.bf16 %v690, %v689
          %v716 = vpack.c.bf16 %v692, %v691
          %v717 = vpack.c.bf16 %v694, %v693
          %v718 = vpack.c.bf16 %v696, %v695
          %v719 = vpack.c.bf16 %v698, %v697
          %v720 = vpack.c.bf16 %v700, %v699
          %v721 = vpack.c.bf16 %v702, %v701
          %v722 = vpack.c.bf16 %v704, %v703
          %v723 = vpack.c.bf16 %v706, %v705
          %v724 = vpack.c.bf16 %v708, %v707
          %v741 = vunpack.c.l.b16 %v709
          %v742 = vunpack.c.h.b16 %v709
          %v743 = vunpack.c.l.b16 %v710
          %v744 = vunpack.c.h.b16 %v710
          %v745 = vunpack.c.l.b16 %v711
          %v746 = vunpack.c.h.b16 %v711
          %v747 = vunpack.c.l.b16 %v712
          %v748 = vunpack.c.h.b16 %v712
          %v749 = vunpack.c.l.b16 %v713
          %v750 = vunpack.c.h.b16 %v713
          %v751 = vunpack.c.l.b16 %v714
          %v752 = vunpack.c.h.b16 %v714
          %v753 = vunpack.c.l.b16 %v715
          %v754 = vunpack.c.h.b16 %v715
          %v755 = vunpack.c.l.b16 %v716
          %v756 = vunpack.c.h.b16 %v716
          %v757 = vunpack.c.l.b16 %v717
          %v758 = vunpack.c.h.b16 %v717
          %v759 = vunpack.c.l.b16 %v718
          %v760 = vunpack.c.h.b16 %v718
          %v761 = vunpack.c.l.b16 %v719
          %v762 = vunpack.c.h.b16 %v719
          %v763 = vunpack.c.l.b16 %v720
          %v764 = vunpack.c.h.b16 %v720
          %v765 = vunpack.c.l.b16 %v721
          %v766 = vunpack.c.h.b16 %v721
          %v767 = vunpack.c.l.b16 %v722
          %v768 = vunpack.c.h.b16 %v722
          %v769 = vunpack.c.l.b16 %v723
          %v770 = vunpack.c.h.b16 %v723
          %v771 = vunpack.c.l.b16 %v724
          %v772 = vunpack.c.h.b16 %v724
          %v773 = vpack.c.b16 %v741, %v741
          %v774 = vpack.c.b16 %v742, %v742
          %v775 = vpack.c.b16 %v743, %v743
          %v776 = vpack.c.b16 %v744, %v744
          %v777 = vpack.c.b16 %v745, %v745
          %v778 = vpack.c.b16 %v746, %v746
          %v779 = vpack.c.b16 %v747, %v747
          %v780 = vpack.c.b16 %v748, %v748
          %v781 = vpack.c.b16 %v749, %v749
          %v782 = vpack.c.b16 %v750, %v750
          %v783 = vpack.c.b16 %v751, %v751
          %v784 = vpack.c.b16 %v752, %v752
          %v785 = vpack.c.b16 %v753, %v753
          %v786 = vpack.c.b16 %v754, %v754
          %v787 = vpack.c.b16 %v755, %v755
          %v788 = vpack.c.b16 %v756, %v756
          %v789 = vpack.c.b16 %v757, %v757
          %v790 = vpack.c.b16 %v758, %v758
          %v791 = vpack.c.b16 %v759, %v759
          %v792 = vpack.c.b16 %v760, %v760
          %v793 = vpack.c.b16 %v761, %v761
          %v794 = vpack.c.b16 %v762, %v762
          %v795 = vpack.c.b16 %v763, %v763
          %v796 = vpack.c.b16 %v764, %v764
          %v797 = vpack.c.b16 %v765, %v765
          %v798 = vpack.c.b16 %v766, %v766
          %v799 = vpack.c.b16 %v767, %v767
          %v800 = vpack.c.b16 %v768, %v768
          %v801 = vpack.c.b16 %v769, %v769
          %v802 = vpack.c.b16 %v770, %v770
          %v803 = vpack.c.b16 %v771, %v771
          %v804 = vpack.c.b16 %v772, %v772
          %837 = vst [vmem:[%s226] sm:$0xf] %v773
          %838 = vst [vmem:[%s226 + $0x4] sm:$0xf] %v774
          %839 = vst [vmem:[%s226 + $0x8] sm:$0xf] %v775
          %840 = vst [vmem:[%s226 + $0xc] sm:$0xf] %v776
          %841 = vst [vmem:[%s226 + $0x10] sm:$0xf] %v777
          %842 = vst [vmem:[%s226 + $0x14] sm:$0xf] %v778
          %843 = vst [vmem:[%s226 + $0x18] sm:$0xf] %v779
          %844 = vst [vmem:[%s226 + $0x1c] sm:$0xf] %v780
          %845 = vst [vmem:[%s226 + $0x20] sm:$0xf] %v781
          %846 = vst [vmem:[%s226 + $0x24] sm:$0xf] %v782
          %847 = vst [vmem:[%s226 + $0x28] sm:$0xf] %v783
          %848 = vst [vmem:[%s226 + $0x2c] sm:$0xf] %v784
          %849 = vst [vmem:[%s226 + $0x30] sm:$0xf] %v785
          %850 = vst [vmem:[%s226 + $0x34] sm:$0xf] %v786
          %851 = vst [vmem:[%s226 + $0x38] sm:$0xf] %v787
          %852 = vst [vmem:[%s226 + $0x3c] sm:$0xf] %v788
          %853 = vst [vmem:[%s226 + $0x40] sm:$0xf] %v789
          %854 = vst [vmem:[%s226 + $0x44] sm:$0xf] %v790
          %855 = vst [vmem:[%s226 + $0x48] sm:$0xf] %v791
          %856 = vst [vmem:[%s226 + $0x4c] sm:$0xf] %v792
          %857 = vst [vmem:[%s226 + $0x50] sm:$0xf] %v793
          %858 = vst [vmem:[%s226 + $0x54] sm:$0xf] %v794
          %859 = vst [vmem:[%s226 + $0x58] sm:$0xf] %v795
          %860 = vst [vmem:[%s226 + $0x5c] sm:$0xf] %v796
          %861 = vst [vmem:[%s226 + $0x60] sm:$0xf] %v797
          %862 = vst [vmem:[%s226 + $0x64] sm:$0xf] %v798
          %863 = vst [vmem:[%s226 + $0x68] sm:$0xf] %v799
          %864 = vst [vmem:[%s226 + $0x6c] sm:$0xf] %v800
          %865 = vst [vmem:[%s226 + $0x70] sm:$0xf] %v801
          %866 = vst [vmem:[%s226 + $0x74] sm:$0xf] %v802
          %867 = vst [vmem:[%s226 + $0x78] sm:$0xf] %v803
          %868 = vst [vmem:[%s226 + $0x7c] sm:$0xf] %v804
        $region48: #{tpu_custom_call.1} parent=31 // pred_fallthru
          _
        %s869 = sand.u32 %s116, 1
        %s870 = scalar_lea.sflag [#allocation5], %s869
        %s871 = sand.u32 %s116, 1
        %s872 = smul.addr %s871, 128
        %s873 = scalar_lea.vmem [#allocation8], %s872
        // Predicated region
        $region49: #{tpu_custom_call.1} parent=31 // pred_check
          %p874 = pneg %p126
        $region50: #{tpu_custom_call.1} parent=31 // pred_check_branch
          %876 = sbr.rel (%p874) target = $region52
        $region51: #{tpu_custom_call.1} parent=31 // pred_region
          %s877 = smul.u32 32, %s25
          %s879 = ssub.s32 2048, 2048
          %880 = vsyncadd %s870, %s879
          %s881 = smul.addr %s877, 64
          %s882 = scalar_lea.hbm %s3, %s881
          %s883 = sshll.u32 %s873, 4
          %s884 = int_to_ptr.vmem [resolvable:$true] %s883
          %889 = dma.vmem_to_hbm [thread:$0]  %s884, 2048, %s882, %s870, 64, 64, 4
        $region52: #{tpu_custom_call.1} parent=31 // pred_fallthru
          _
      $region32: #{tpu_custom_call.1} parent=5 // pred_fallthru
        _
      %p890 = scmp.le.s32.totalorder 2, %s16
      // Predicated region
      $region53: #{tpu_custom_call.1} parent=5 // pred_check
        %p891 = pneg %p890
      $region54: #{tpu_custom_call.1} parent=5 // pred_check_branch
        %893 = sbr.rel (%p891) target = $region56
      $region55: #{tpu_custom_call.1} parent=5 // pred_region
        %s894 = ssub.s32 %s16, 2
        // Predicated region
        $region57: #{tpu_custom_call.1} parent=55 // pred_check
          %p895 = pneg %p132
        $region58: #{tpu_custom_call.1} parent=55 // pred_check_branch
          %897 = sbr.rel (%p895) target = $region60
        $region59: #{tpu_custom_call.1} parent=55 // pred_region
          %s898 = sand.u32 %s117, 1
          %s899 = scalar_lea.sflag [#allocation5], %s898
          %s900 = sand.u32 %s117, 1
          %s901 = smul.addr %s900, 128
          %s902 = scalar_lea.vmem [#allocation8], %s901
          %903 = dma.done %s899, 2048
        $region60: #{tpu_custom_call.1} parent=55 // pred_fallthru
          _
      $region56: #{tpu_custom_call.1} parent=5 // pred_fallthru
        _
    $region6: #{tpu_custom_call.1} parent=1 // loop_footer
      %s20 = sadd.s32 1, %s16
    $region7: #{tpu_custom_call.1} parent=1 // loop_footer_branch
      %15 = sbr.rel target = $region3
    $region8: #{tpu_custom_call.1} parent=1 // loop_exit
      _
    %904 = vsyncpa [#allocation4], 1
    %s905 = scalar_lea.sflag [#allocation4], 1
    %906 = vsyncpa %s905, 1
    %907 = vsyncpa [#allocation7], 1
    %908 = vsyncpa [#allocation5], 1
    %s909 = scalar_lea.sflag [#allocation5], 1
    %910 = vsyncpa %s909, 1

</llo_original>
